<compile_context>
chip_gen: v5e
topology: v5e:2x2
jax: 0.10.0
libtpu: 0.0.40
codegen_flags: <defaults>
</compile_context>

<pallas_src>
import jax
import jax.numpy as jnp
from jax.experimental import pallas as pl
from jax.experimental.pallas import tpu as pltpu

# ----------------------------- configuration -------------------------------
N, C, H, W = 2, 3, 16, 16      # input images (NCHW)
STRIDE = 2
HO, WO = H // STRIDE, W // STRIDE
FEAT = 32                      # backbone feature channels
KCLS = 8                       # number of object classes
KHEAD = KCLS + 4               # cls+reg head width (12)
THEAD = 16                     # padded head / target-slab width
KPAD = 32                      # im2col contraction dim, padded 27 -> 32
P = N * HO * WO                # total anchors (1 anchor per location) = 128
ALPHA = 0.25                   # focal-loss alpha (gamma = 2 hard-coded)

MEAN_VALS = (0.485, 0.456, 0.406)                     # python floats (pad consts)
IMAGENET_MEAN = jnp.array(MEAN_VALS, jnp.float32)
IMAGENET_STD = jnp.array([0.229, 0.224, 0.225], jnp.float32)


# ------------------------------ fused kernel --------------------------------
def fused_kernel(patch_ref, wconv_ref, whead_ref, bhead_ref, tgt_ref, loss_ref):
    # --- backbone: im2col matmul + ReLU.  ImageNet norm AND conv bias are
    # --- folded into the weight slab (bias rides the ones pad-column), so
    # --- this is a single bf16 MXU push with f32 accumulation. ---------------
    feat = jnp.maximum(
        jnp.dot(patch_ref[...], wconv_ref[...],
                preferred_element_type=jnp.float32), 0.0)            # (P, FEAT) f32

    # --- fused cls + reg heads, zero-padded to 16 lanes so the output layout
    # --- matches the packed target slab exactly: one bf16 MXU push. ---------
    head = jnp.dot(feat.astype(jnp.bfloat16), whead_ref[...],
                   preferred_element_type=jnp.float32) + bhead_ref[...]  # (P, 16) f32

    tgt = tgt_ref[...]                                                # (P, 16) f32
    lane = jax.lax.broadcasted_iota(jnp.int32, (P, THEAD), 1)
    cls_m = (lane < KCLS).astype(jnp.float32)                         # lanes 0..7
    reg_m = ((lane >= KCLS) & (lane < KHEAD)).astype(jnp.float32)     # lanes 8..11
    fg_m = (lane == KHEAD).astype(jnp.float32)                        # lane 12

    # per-anchor foreground flag recovered from lane 12 of the target slab
    fg_row = jnp.sum(tgt * fg_m, axis=-1, keepdims=True)              # (P, 1)
    nfg = jnp.maximum(jnp.sum(fg_row), 1.0)

    # --- sigmoid focal loss (gamma=2) on the full (P,16) tile, lane-masked;
    # --- one exp(-|x|) shared between the sigmoid and the stable
    # --- BCE-with-logits term.  All math f32. -------------------------------
    t = tgt * cls_m                                                   # cls targets
    e = jnp.exp(-jnp.abs(head))                      # single EUP exp / element
    inv1pe = 1.0 / (1.0 + e)
    p = jnp.where(head >= 0.0, inv1pe, e * inv1pe)   # == sigmoid(head), exact
    ce = jnp.maximum(head, 0.0) - head * t + jnp.log(1.0 + e)
    pt = p * t + (1.0 - p) * (1.0 - t)
    at = ALPHA * t + (1.0 - ALPHA) * (1.0 - t)
    one_m_pt = 1.0 - pt
    focal = at * one_m_pt * one_m_pt * ce * cls_m

    # --- masked L1 regression loss on the same tile (reg lanes, fg rows) ----
    l1 = jnp.abs(head - tgt) * reg_m * fg_row

    # total_loss = sum(loss_dict.values()) = focal/nfg + l1/nfg
    # single combined cross-lane reduce -> scalar SMEM store (no (8,128) slab)
    loss_ref[0, 0] = jnp.sum(focal + l1) / nfg


def fused_head_loss(patches, w_conv, w_head, b_head, tgt):
    out = pl.pallas_call(
        fused_kernel,
        out_shape=jax.ShapeDtypeStruct((1, 1), jnp.float32),
        grid=(1,),
        in_specs=[pl.BlockSpec((P, KPAD), lambda i: (0, 0)),      # bf16 patches
                  pl.BlockSpec((KPAD, FEAT), lambda i: (0, 0)),   # bf16 folded conv w
                  pl.BlockSpec((FEAT, THEAD), lambda i: (0, 0)),  # bf16 fused head w
                  pl.BlockSpec((1, THEAD), lambda i: (0, 0)),     # f32 head bias
                  pl.BlockSpec((P, THEAD), lambda i: (0, 0))],    # f32 packed targets
        out_specs=pl.BlockSpec((1, 1), lambda i: (0, 0),
                               memory_space=pltpu.MemorySpace.SMEM),
        compiler_params=pltpu.CompilerParams(
            dimension_semantics=("arbitrary",)),
    )(patches, w_conv, w_head, b_head, tgt)
    return out[0, 0]


# ------------------------ parameter / input preparation ----------------------
def prepare_params(params):
    """One-time host-side folding (zero runtime cost inside the forward):
       * ImageNet normalization folded into the conv weights,
       * conv bias folded into row 27 of the 27->32 padded weight slab (the
         matching patch column is set to 1.0 in build_patches),
       * cls / reg head weights & biases concatenated and padded 12 -> 16 so
         the head output lanes match the packed target slab,
       * MXU operands cast to bf16 (loss math stays f32 in-kernel)."""
    inv_std = 1.0 / IMAGENET_STD                                  # (C,)
    scale = jnp.repeat(inv_std, 9)[:, None]                       # rows are c-major
    shift = jnp.repeat(IMAGENET_MEAN * inv_std, 9)[:, None]       # (C*9, 1)
    w_fold = params["w_conv"] * scale                             # (C*9, FEAT)
    b_fold = params["b_conv"] - jnp.sum(shift * params["w_conv"],
                                        axis=0, keepdims=True)    # (1, FEAT)
    w_conv = jnp.concatenate(
        [w_fold, b_fold,
         jnp.zeros((KPAD - C * 9 - 1, FEAT), jnp.float32)], axis=0)  # (32, FEAT)

    w_head = jnp.concatenate(
        [params["w_cls"], params["w_reg"],
         jnp.zeros((FEAT, THEAD - KHEAD), jnp.float32)], axis=1)     # (FEAT, 16)
    b_head = jnp.concatenate(
        [params["b_cls"], params["b_reg"],
         jnp.zeros((1, THEAD - KHEAD), jnp.float32)], axis=1)        # (1, 16)

    return {"w_conv": w_conv.astype(jnp.bfloat16),
            "w_head": w_head.astype(jnp.bfloat16),
            "b_head": b_head}


def build_patches(image):
    """im2col for the 3x3/stride-2/pad-1 conv on the RAW image.

    Normalization lives in the folded conv weights, so the border is padded
    with the per-channel ImageNet mean (== zero in normalized space), which
    reproduces pad(normalize(x)) exactly.  Column 27 is a constant 1.0 that
    carries the folded conv bias.  At this synthetic scale the ~16 KB patch
    slab stays in XLA; at real RetinaNet scale this extraction should move
    in-kernel (shifted pl.ds reads of the padded image) to avoid the 9x HBM
    duplication.
    """
    chans = [jnp.pad(image[:, c], ((0, 0), (1, 1), (1, 1)),
                     constant_values=MEAN_VALS[c]) for c in range(C)]
    xp = jnp.stack(chans, axis=1)                      # (N, C, H+2, W+2)
    slabs = []
    for dy in range(3):
        for dx in range(3):
            slabs.append(xp[:, :, dy:dy + 2 * HO:2, dx:dx + 2 * WO:2])
    pat = jnp.stack(slabs, axis=2)                     # (N, C, 9, HO, WO)
    pat = pat.transpose(0, 3, 4, 1, 2)                 # (N, HO, WO, C, 9)
    pat = pat.reshape(P, C * 9)
    pat = jnp.concatenate(
        [pat,
         jnp.ones((P, 1), jnp.float32),                # bias column (col 27)
         jnp.zeros((P, KPAD - C * 9 - 1), jnp.float32)], axis=1)   # (P, 32)
    return pat.astype(jnp.bfloat16)


# --------------------------- target assignment glue -------------------------
def box_iou(a, b):
    area_a = (a[:, 2] - a[:, 0]) * (a[:, 3] - a[:, 1])
    area_b = (b[:, 2] - b[:, 0]) * (b[:, 3] - b[:, 1])
    lt = jnp.maximum(a[:, None, :2], b[None, :, :2])
    rb = jnp.minimum(a[:, None, 2:], b[None, :, 2:])
    wh = jnp.clip(rb - lt, 0.0)
    inter = wh[..., 0] * wh[..., 1]
    return inter / (area_a[:, None] + area_b[None, :] - inter + 1e-9)


def make_anchors():
    ys, xs = jnp.meshgrid(jnp.arange(HO), jnp.arange(WO), indexing="ij")
    cx = (xs.reshape(-1) + 0.5) * STRIDE
    cy = (ys.reshape(-1) + 0.5) * STRIDE
    size = 4.0
    a = jnp.stack([cx - size / 2, cy - size / 2,
                   cx + size / 2, cy + size / 2], axis=-1)   # (HO*WO, 4)
    return jnp.tile(a, (N, 1))                               # (P, 4)


def assign_targets(gt_boxes, gt_labels):
    """Anchor/GT matching.  Returns ONE packed, lane-dense (P, 16) target slab
    laid out to match the padded head output:
        lanes 0..7  : one-hot cls targets (fg-masked)
        lanes 8..11 : box regression targets (fg-masked)
        lane  12    : foreground flag
        lanes 13..15: zero pad
    NOTE: the PyTorch forward passes a single target dict (`[target]`, batch 1);
    here the same target is replicated to every image in the batch.
    TODO(synk): torchvision RetinaNet treats IoU in [0.4, 0.5) as "ignore";
    this synthetic matcher counts them as negatives.
    """
    anchors = make_anchors()
    iou = box_iou(anchors, gt_boxes)                 # (P, M)
    best_iou = iou.max(-1)
    best_idx = iou.argmax(-1)
    fg = (best_iou >= 0.5).astype(jnp.float32)[:, None]          # (P, 1)

    cls_t = jax.nn.one_hot(gt_labels[best_idx], KCLS) * fg       # (P, K)

    matched = gt_boxes[best_idx]
    aw = anchors[:, 2] - anchors[:, 0]
    ah = anchors[:, 3] - anchors[:, 1]
    ax = (anchors[:, 0] + anchors[:, 2]) * 0.5
    ay = (anchors[:, 1] + anchors[:, 3]) * 0.5
    gw = matched[:, 2] - matched[:, 0]
    gh = matched[:, 3] - matched[:, 1]
    gx = (matched[:, 0] + matched[:, 2]) * 0.5
    gy = (matched[:, 1] + matched[:, 3]) * 0.5
    reg_t = jnp.stack([(gx - ax) / aw, (gy - ay) / ah,
                       jnp.log(gw / aw), jnp.log(gh / ah)], axis=-1) * fg

    tgt = jnp.concatenate(
        [cls_t, reg_t, fg, jnp.zeros((P, THEAD - KHEAD - 1), jnp.float32)],
        axis=1)                                                   # (P, 16)
    return tgt


# ------------------------------- full forward -------------------------------
def detection_loss(image, boxes, labels, prepared):
    # mirrors: total_loss = sum(loss_dict.values())  with
    # loss_dict = {"classification": focal, "bbox_regression": l1}
    patches = build_patches(image)
    tgt = assign_targets(boxes[0], labels[0])
    return fused_head_loss(patches,
                           prepared["w_conv"], prepared["w_head"],
                           prepared["b_head"], tgt)


def init_params(key):
    k1, k2, k3 = jax.random.split(key, 3)
    prior_bias = -jnp.log((1.0 - 0.01) / 0.01)  # RetinaNet focal-loss prior
    return {
        "w_conv": 0.1 * jax.random.normal(k1, (C * 9, FEAT), jnp.float32),
        "b_conv": jnp.zeros((1, FEAT), jnp.float32),
        "w_cls": 0.05 * jax.random.normal(k2, (FEAT, KCLS), jnp.float32),
        "b_cls": jnp.full((1, KCLS), prior_bias, jnp.float32),
        "w_reg": 0.05 * jax.random.normal(k3, (FEAT, 4), jnp.float32),
        "b_reg": jnp.zeros((1, 4), jnp.float32),
    }


if __name__ == "__main__":
    key = jax.random.PRNGKey(0)
    kimg, kparam = jax.random.split(key)

    # input image batch (NCHW, values in [0,1] as after ToTensor)
    image = jax.random.uniform(kimg, (N, C, H, W), jnp.float32)

    # target dict (batched leading dim of 1, as in the PyTorch module):
    # target['boxes'][0] -> (M, 4), target['labels'][0] -> (M,)
    boxes = jnp.array([[[3.0, 3.0, 7.0, 7.0],
                        [9.0, 3.0, 13.0, 7.0],
                        [3.0, 9.0, 7.0, 13.0]]], jnp.float32)   # (1, 3, 4)
    labels = jnp.array([[1, 4, 7]], jnp.int32)                   # (1, 3)

    params = init_params(kparam)
    prepared = prepare_params(params)   # one-time host-side fold

    loss = jax.jit(detection_loss)(image, boxes, labels, prepared)
    loss = jax.block_until_ready(loss)
    assert loss.shape == () or loss.size == 1
    assert bool(jnp.isfinite(loss))
    print("KERNEL_OK")
</pallas_src>

<mosaic_0001>
module attributes {stable_mosaic.version = 11 : i64} {
  func.func @fused_kernel(%arg0: i32, %arg1: memref<128x32xbf16, #tpu.memory_space<vmem>>, %arg2: memref<32x32xbf16, #tpu.memory_space<vmem>>, %arg3: memref<32x16xbf16, #tpu.memory_space<vmem>>, %arg4: memref<1x16xf32, #tpu.memory_space<vmem>>, %arg5: memref<128x16xf32, #tpu.memory_space<vmem>>, %arg6: memref<1x1xf32, #tpu.memory_space<smem>>) attributes {dimension_semantics = [#tpu.dimension_semantics<arbitrary>], iteration_bounds = array<i64: 1>, scalar_prefetch = 0 : i64, scratch_operands = 0 : i64, tpu.core_type = #tpu.core_type<tc>, window_params = [{pipeline_mode = #tpu.pipeline_mode<synchronous>, transform_indices = @transform_0, window_bounds = array<i64: 128, 32>}, {pipeline_mode = #tpu.pipeline_mode<synchronous>, transform_indices = @transform_1, window_bounds = array<i64: 32, 32>}, {pipeline_mode = #tpu.pipeline_mode<synchronous>, transform_indices = @transform_2, window_bounds = array<i64: 32, 16>}, {pipeline_mode = #tpu.pipeline_mode<synchronous>, transform_indices = @transform_3, window_bounds = array<i64: 1, 16>}, {pipeline_mode = #tpu.pipeline_mode<synchronous>, transform_indices = @transform_4, window_bounds = array<i64: 128, 16>}, {transform_indices = @transform_5, window_bounds = array<i64: 1, 1>}]} {
    %c0 = arith.constant 0 : index
    %c0_0 = arith.constant 0 : index
    %0 = vector.load %arg1[%c0, %c0_0] : memref<128x32xbf16, #tpu.memory_space<vmem>>, vector<128x32xbf16>
    %c0_1 = arith.constant 0 : index
    %c0_2 = arith.constant 0 : index
    %1 = vector.load %arg2[%c0_1, %c0_2] : memref<32x32xbf16, #tpu.memory_space<vmem>>, vector<32x32xbf16>
    %cst = arith.constant dense<0.000000e+00> : vector<128x32xf32>
    %2 = tpu.matmul %0, %1, %cst {dimension_numbers = #tpu.dot_dimension_numbers<[1], [0], [0], [1], [0, 0, 1, 1], [], []>} : vector<128x32xbf16>, vector<32x32xbf16>, vector<128x32xf32> -> vector<128x32xf32>
    %cst_3 = arith.constant 0.000000e+00 : f32
    %3 = vector.broadcast %cst_3 : f32 to vector<128x32xf32>
    %4 = arith.maximumf %2, %3 : vector<128x32xf32>
    %5 = arith.truncf %4 : vector<128x32xf32> to vector<128x32xbf16>
    %c0_4 = arith.constant 0 : index
    %c0_5 = arith.constant 0 : index
    %6 = vector.load %arg3[%c0_4, %c0_5] : memref<32x16xbf16, #tpu.memory_space<vmem>>, vector<32x16xbf16>
    %cst_6 = arith.constant dense<0.000000e+00> : vector<128x16xf32>
    %7 = tpu.matmul %5, %6, %cst_6 {dimension_numbers = #tpu.dot_dimension_numbers<[1], [0], [0], [1], [0, 0, 1, 1], [], []>} : vector<128x32xbf16>, vector<32x16xbf16>, vector<128x16xf32> -> vector<128x16xf32>
    %c0_7 = arith.constant 0 : index
    %c0_8 = arith.constant 0 : index
    %8 = vector.load %arg4[%c0_7, %c0_8] : memref<1x16xf32, #tpu.memory_space<vmem>>, vector<1x16xf32>
    %9 = vector.broadcast %8 : vector<1x16xf32> to vector<128x16xf32>
    %10 = arith.addf %7, %9 : vector<128x16xf32>
    %c0_9 = arith.constant 0 : index
    %c0_10 = arith.constant 0 : index
    %11 = vector.load %arg5[%c0_9, %c0_10] : memref<128x16xf32, #tpu.memory_space<vmem>>, vector<128x16xf32>
    %12 = tpu.iota {dimensions = array<i32: 1>} : vector<128x16xi32>
    %c8_i32 = arith.constant 8 : i32
    %13 = vector.broadcast %c8_i32 : i32 to vector<128x16xi32>
    %14 = arith.cmpi slt, %12, %13 : vector<128x16xi32>
    %15 = arith.extui %14 : vector<128x16xi1> to vector<128x16xi32>
    %16 = arith.sitofp %15 : vector<128x16xi32> to vector<128x16xf32>
    %c8_i32_11 = arith.constant 8 : i32
    %17 = vector.broadcast %c8_i32_11 : i32 to vector<128x16xi32>
    %18 = arith.cmpi sge, %12, %17 : vector<128x16xi32>
    %c12_i32 = arith.constant 12 : i32
    %19 = vector.broadcast %c12_i32 : i32 to vector<128x16xi32>
    %20 = arith.cmpi slt, %12, %19 : vector<128x16xi32>
    %21 = arith.andi %18, %20 : vector<128x16xi1>
    %22 = arith.extui %21 : vector<128x16xi1> to vector<128x16xi32>
    %23 = arith.sitofp %22 : vector<128x16xi32> to vector<128x16xf32>
    %c12_i32_12 = arith.constant 12 : i32
    %24 = vector.broadcast %c12_i32_12 : i32 to vector<128x16xi32>
    %25 = arith.cmpi eq, %12, %24 : vector<128x16xi32>
    %26 = arith.extui %25 : vector<128x16xi1> to vector<128x16xi32>
    %27 = arith.sitofp %26 : vector<128x16xi32> to vector<128x16xf32>
    %28 = arith.mulf %11, %27 : vector<128x16xf32>
    %cst_13 = arith.constant dense<0.000000e+00> : vector<128xf32>
    %29 = vector.multi_reduction <add>, %28, %cst_13 [1] : vector<128x16xf32> to vector<128xf32>
    %30 = vector.shape_cast %29 : vector<128xf32> to vector<128x1xf32>
    %31 = vector.shape_cast %30 : vector<128x1xf32> to vector<1x128x1xf32>
    %cst_14 = arith.constant dense<0.000000e+00> : vector<1xf32>
    %32 = vector.multi_reduction <add>, %31, %cst_14 [1, 2] : vector<1x128x1xf32> to vector<1xf32>
    %33 = vector.shape_cast %32 : vector<1xf32> to vector<1x1x1xf32>
    %34 = vector.extract %33[0, 0, 0] : f32 from vector<1x1x1xf32>
    %cst_15 = arith.constant 1.000000e+00 : f32
    %35 = arith.maximumf %34, %cst_15 : f32
    %36 = arith.mulf %11, %16 : vector<128x16xf32>
    %37 = math.absf %10 : vector<128x16xf32>
    %cst_16 = arith.constant 0.000000e+00 : f32
    %38 = vector.broadcast %cst_16 : f32 to vector<128x16xf32>
    %39 = arith.subf %38, %37 : vector<128x16xf32>
    %40 = math.exp %39 : vector<128x16xf32>
    %cst_17 = arith.constant 1.000000e+00 : f32
    %41 = vector.broadcast %cst_17 : f32 to vector<128x16xf32>
    %42 = arith.addf %41, %40 : vector<128x16xf32>
    %cst_18 = arith.constant 1.000000e+00 : f32
    %43 = vector.broadcast %cst_18 : f32 to vector<128x16xf32>
    %44 = arith.divf %43, %42 : vector<128x16xf32>
    %cst_19 = arith.constant 0.000000e+00 : f32
    %45 = vector.broadcast %cst_19 : f32 to vector<128x16xf32>
    %46 = arith.cmpf oge, %10, %45 : vector<128x16xf32>
    %47 = arith.mulf %40, %44 : vector<128x16xf32>
    %48 = arith.select %46, %44, %47 : vector<128x16xi1>, vector<128x16xf32>
    %cst_20 = arith.constant 0.000000e+00 : f32
    %49 = vector.broadcast %cst_20 : f32 to vector<128x16xf32>
    %50 = arith.maximumf %10, %49 : vector<128x16xf32>
    %51 = arith.mulf %10, %36 : vector<128x16xf32>
    %52 = arith.subf %50, %51 : vector<128x16xf32>
    %cst_21 = arith.constant 1.000000e+00 : f32
    %53 = vector.broadcast %cst_21 : f32 to vector<128x16xf32>
    %54 = arith.addf %53, %40 : vector<128x16xf32>
    %55 = math.log %54 : vector<128x16xf32>
    %56 = arith.addf %52, %55 : vector<128x16xf32>
    %57 = arith.mulf %48, %36 : vector<128x16xf32>
    %cst_22 = arith.constant 1.000000e+00 : f32
    %58 = vector.broadcast %cst_22 : f32 to vector<128x16xf32>
    %59 = arith.subf %58, %48 : vector<128x16xf32>
    %cst_23 = arith.constant 1.000000e+00 : f32
    %60 = vector.broadcast %cst_23 : f32 to vector<128x16xf32>
    %61 = arith.subf %60, %36 : vector<128x16xf32>
    %62 = arith.mulf %59, %61 : vector<128x16xf32>
    %63 = arith.addf %57, %62 : vector<128x16xf32>
    %cst_24 = arith.constant 2.500000e-01 : f32
    %64 = vector.broadcast %cst_24 : f32 to vector<128x16xf32>
    %65 = arith.mulf %64, %36 : vector<128x16xf32>
    %cst_25 = arith.constant 1.000000e+00 : f32
    %66 = vector.broadcast %cst_25 : f32 to vector<128x16xf32>
    %67 = arith.subf %66, %36 : vector<128x16xf32>
    %cst_26 = arith.constant 7.500000e-01 : f32
    %68 = vector.broadcast %cst_26 : f32 to vector<128x16xf32>
    %69 = arith.mulf %68, %67 : vector<128x16xf32>
    %70 = arith.addf %65, %69 : vector<128x16xf32>
    %cst_27 = arith.constant 1.000000e+00 : f32
    %71 = vector.broadcast %cst_27 : f32 to vector<128x16xf32>
    %72 = arith.subf %71, %63 : vector<128x16xf32>
    %73 = arith.mulf %70, %72 : vector<128x16xf32>
    %74 = arith.mulf %73, %72 : vector<128x16xf32>
    %75 = arith.mulf %74, %56 : vector<128x16xf32>
    %76 = arith.mulf %75, %16 : vector<128x16xf32>
    %77 = arith.subf %10, %11 : vector<128x16xf32>
    %78 = math.absf %77 : vector<128x16xf32>
    %79 = arith.mulf %78, %23 : vector<128x16xf32>
    %80 = vector.broadcast %30 : vector<128x1xf32> to vector<128x16xf32>
    %81 = arith.mulf %79, %80 : vector<128x16xf32>
    %82 = arith.addf %76, %81 : vector<128x16xf32>
    %83 = vector.shape_cast %82 : vector<128x16xf32> to vector<1x128x16xf32>
    %cst_28 = arith.constant dense<0.000000e+00> : vector<1xf32>
    %84 = vector.multi_reduction <add>, %83, %cst_28 [1, 2] : vector<1x128x16xf32> to vector<1xf32>
    %85 = vector.shape_cast %84 : vector<1xf32> to vector<1x1x1xf32>
    %86 = vector.extract %85[0, 0, 0] : f32 from vector<1x1x1xf32>
    %87 = arith.divf %86, %35 : f32
    %c0_29 = arith.constant 0 : index
    %c0_30 = arith.constant 0 : index
    %88 = memref.load %arg6[%c0_29, %c0_30] : memref<1x1xf32, #tpu.memory_space<smem>>
    memref.store %87, %arg6[%c0_29, %c0_30] : memref<1x1xf32, #tpu.memory_space<smem>>
    return
  }
  func.func @transform_0(%arg0: i32) -> (i32, i32) {
    %c0_i32 = arith.constant 0 : i32
    %c0_i32_0 = arith.constant 0 : i32
    %c0_i32_1 = arith.constant 0 : i32
    return %c0_i32, %c0_i32_0 : i32, i32
  }
  func.func @transform_1(%arg0: i32) -> (i32, i32) {
    %c0_i32 = arith.constant 0 : i32
    %c0_i32_0 = arith.constant 0 : i32
    %c0_i32_1 = arith.constant 0 : i32
    return %c0_i32, %c0_i32_0 : i32, i32
  }
  func.func @transform_2(%arg0: i32) -> (i32, i32) {
    %c0_i32 = arith.constant 0 : i32
    %c0_i32_0 = arith.constant 0 : i32
    %c0_i32_1 = arith.constant 0 : i32
    return %c0_i32, %c0_i32_0 : i32, i32
  }
  func.func @transform_3(%arg0: i32) -> (i32, i32) {
    %c0_i32 = arith.constant 0 : i32
    %c0_i32_0 = arith.constant 0 : i32
    %c0_i32_1 = arith.constant 0 : i32
    return %c0_i32, %c0_i32_0 : i32, i32
  }
  func.func @transform_4(%arg0: i32) -> (i32, i32) {
    %c0_i32 = arith.constant 0 : i32
    %c0_i32_0 = arith.constant 0 : i32
    %c0_i32_1 = arith.constant 0 : i32
    return %c0_i32, %c0_i32_0 : i32, i32
  }
  func.func @transform_5(%arg0: i32) -> (i32, i32) {
    %c0_i32 = arith.constant 0 : i32
    %c0_i32_0 = arith.constant 0 : i32
    %c0_i32_1 = arith.constant 0 : i32
    return %c0_i32, %c0_i32_0 : i32, i32
  }
}

</mosaic_0001>

<llo_original>
// kernel: tile.9
$region0: #{tile.9}
  %s0 = inlined_call_operand.vmem [shape: f32[2,64,4], index: 0, kind: input, shape index: {}]
  %s1 = inlined_call_operand.vmem [shape: f32[128,4], index: 1, kind: output, shape index: {}]
  $region1: #{tile.9} parent=0
    #allocation0 [shape = 'u8[4096]{0}', space=vmem, size = 0x1000, scoped, tag = 'scoped mem for output reshape']
    #allocation1 [shape = 'u8[16384]{0}', space=vmem, size = 0x4000, scoped, tag = 'scoped mem for input reshape']
    %s3 = ssub.s32 4, 1
    %s4 = scalar_lea.vmem %s0, 6
    %v5 = vld [vmem:[%s4] sm:%s3]
    %s6 = scalar_lea.vmem [#allocation1], 24
    %7 = vst [vmem:[%s6] sm:%s3] %v5
    %s8 = scalar_lea.vmem %s0, 4
    %v9 = vld [vmem:[%s8] sm:%s3]
    %s10 = scalar_lea.vmem [#allocation1], 16
    %11 = vst [vmem:[%s10] sm:%s3] %v9
    %s12 = scalar_lea.vmem %s0, 2
    %v13 = vld [vmem:[%s12] sm:%s3]
    %s14 = scalar_lea.vmem [#allocation1], 8
    %15 = vst [vmem:[%s14] sm:%s3] %v13
    %v16 = vld [vmem:[%s0] sm:%s3]
    %17 = vst [vmem:[#allocation1] sm:%s3] %v16
    %v18 = vld [vmem:[#allocation1] ss:$8 sm:$0xf]
    %vm19 = vcmask 523264
    %20 = vst.msk [vmem:[#allocation0] sm:$0xf] %vm19, %v18
    %s21 = scalar_lea.vmem [#allocation1], 1
    %v22 = vld [vmem:[%s21] ss:$8 sm:$0xf]
    %23 = vrot.lane.b32.xlu0 %v22, 64
    %v24 = vpop.permute.xlu0 %23
    %vm25 = vcmask 1048064
    %26 = vst.msk [vmem:[#allocation0] sm:$0xf] %vm25, %v24
    %s28 = ssub.s32 16, 1
    %v29 = vld [vmem:[#allocation0] sm:%s28]
    %s31 = ssub.s32 16, 1
    %32 = vst [vmem:[%s1] sm:%s31] %v29

// kernel: detection_loss.1
$region0: #{detection_loss.1}
  #allocation0 [shape = 'u32[]', space=smem, size = 0x4, offset = 0x4, fixed_abs, tag = 'smem constant byte address 0x4 - core index']
  #allocation1 [shape = 'u32[72,128]{1,0:T(1,128)}', space=vmem, size = 0x9000, scoped, tag = 'internal scratch']
  %s0 = inlined_call_operand.vmem [shape: bf16[128,32], index: 0, kind: input, shape index: {}]
  %s1 = inlined_call_operand.vmem [shape: bf16[32,32], index: 1, kind: input, shape index: {}]
  %s2 = inlined_call_operand.vmem [shape: bf16[32,16], index: 2, kind: input, shape index: {}]
  %s3 = inlined_call_operand.vmem [shape: f32[1,16], index: 3, kind: input, shape index: {}]
  %s4 = inlined_call_operand.vmem [shape: f32[128,16], index: 4, kind: input, shape index: {}]
  %s5 = inlined_call_operand.hbm [shape: f32[1,1], index: 5, kind: output, shape index: {}]
  %s6 = sld [smem:[#allocation0]]
  $region30: #{detection_loss.1} parent=0
    _
  %s8 = ssub.s32 1, %s6
  %s9 = scalar_select 0, %s8, %s6
  $region1: #{detection_loss.1} parent=0
    #allocation2 [shape = 'u8[512]{0}', space=smem, size = 0x200, scoped, tag = 'output window, operand 0, single buffered']
    #allocation3 [shape = 's32[1]{0}', space=sflag, size = 0x4, scoped, tag = 'scoped memory for detection_loss.1']
    %10 = vsyncpa [#allocation3], 0
    // Predicated region
    $region2: #{detection_loss.1} parent=1 // pred_check
      _
    $region3: #{detection_loss.1} parent=1 // pred_check_branch
      %12 = sbr.rel (0) target = $region5
    $region4: #{detection_loss.1} parent=1 // pred_region
      _
    $region5: #{detection_loss.1} parent=1 // pred_fallthru
      _
    // Predicated region
    $region6: #{detection_loss.1} parent=1 // pred_check
      _
    $region7: #{detection_loss.1} parent=1 // pred_check_branch
      %14 = sbr.rel (0) target = $region9
    $region8: #{detection_loss.1} parent=1 // pred_region
      _
    $region9: #{detection_loss.1} parent=1 // pred_fallthru
      _
    // Predicated region
    $region10: #{detection_loss.1} parent=1 // pred_check
      _
    $region11: #{detection_loss.1} parent=1 // pred_check_branch
      %16 = sbr.rel (0) target = $region13
    $region12: #{detection_loss.1} parent=1 // pred_region
      _
    $region13: #{detection_loss.1} parent=1 // pred_fallthru
      _
    // Predicated region
    $region14: #{detection_loss.1} parent=1 // pred_check
      _
    $region15: #{detection_loss.1} parent=1 // pred_check_branch
      %18 = sbr.rel (0) target = $region17
    $region16: #{detection_loss.1} parent=1 // pred_region
      _
    $region17: #{detection_loss.1} parent=1 // pred_fallthru
      _
    // Predicated region
    $region18: #{detection_loss.1} parent=1 // pred_check
      _
    $region19: #{detection_loss.1} parent=1 // pred_check_branch
      %20 = sbr.rel (0) target = $region21
    $region20: #{detection_loss.1} parent=1 // pred_region
      _
    $region21: #{detection_loss.1} parent=1 // pred_fallthru
      _
    %v22 = vld [vmem:[%s0] sm:$0xf]
    %v23 = vld [vmem:[%s0 + $0x4] sm:$0xf]
    %v24 = vld [vmem:[%s0 + $0x8] sm:$0xf]
    %v25 = vld [vmem:[%s0 + $0xc] sm:$0xf]
    %v26 = vld [vmem:[%s0 + $0x10] sm:$0xf]
    %v27 = vld [vmem:[%s0 + $0x14] sm:$0xf]
    %v28 = vld [vmem:[%s0 + $0x18] sm:$0xf]
    %v29 = vld [vmem:[%s0 + $0x1c] sm:$0xf]
    %v30 = vld [vmem:[%s0 + $0x20] sm:$0xf]
    %v31 = vld [vmem:[%s0 + $0x24] sm:$0xf]
    %v32 = vld [vmem:[%s0 + $0x28] sm:$0xf]
    %v33 = vld [vmem:[%s0 + $0x2c] sm:$0xf]
    %v34 = vld [vmem:[%s0 + $0x30] sm:$0xf]
    %v35 = vld [vmem:[%s0 + $0x34] sm:$0xf]
    %v36 = vld [vmem:[%s0 + $0x38] sm:$0xf]
    %v37 = vld [vmem:[%s0 + $0x3c] sm:$0xf]
    %v38 = vld [vmem:[%s1] sm:$0xf]
    %v39 = vld [vmem:[%s1 + $0x4] sm:$0xf]
    %v40 = vld [vmem:[%s1 + $0x8] sm:$0xf]
    %v41 = vld [vmem:[%s1 + $0xc] sm:$0xf]
    %v58 = vunpack.c.l.b16 %v22
    %v59 = vunpack.c.l.b16 %v23
    %v60 = vunpack.c.l.b16 %v24
    %v61 = vunpack.c.l.b16 %v25
    %v62 = vunpack.c.l.b16 %v26
    %v63 = vunpack.c.l.b16 %v27
    %v64 = vunpack.c.l.b16 %v28
    %v65 = vunpack.c.l.b16 %v29
    %v66 = vunpack.c.l.b16 %v30
    %v67 = vunpack.c.l.b16 %v31
    %v68 = vunpack.c.l.b16 %v32
    %v69 = vunpack.c.l.b16 %v33
    %v70 = vunpack.c.l.b16 %v34
    %v71 = vunpack.c.l.b16 %v35
    %v72 = vunpack.c.l.b16 %v36
    %v73 = vunpack.c.l.b16 %v37
    %v74 = vpack.c.b16 %v59, %v58
    %v75 = vpack.c.b16 %v61, %v60
    %v76 = vpack.c.b16 %v63, %v62
    %v77 = vpack.c.b16 %v65, %v64
    %v78 = vpack.c.b16 %v67, %v66
    %v79 = vpack.c.b16 %v69, %v68
    %v80 = vpack.c.b16 %v71, %v70
    %v81 = vpack.c.b16 %v73, %v72
    %v86 = vunpack.c.l.b16 %v38
    %v87 = vunpack.c.l.b16 %v39
    %v88 = vunpack.c.l.b16 %v40
    %v89 = vunpack.c.l.b16 %v41
    %v90 = vpack.c.b16 %v87, %v86
    %v91 = vpack.c.b16 %v89, %v88
    %vm94 = vcmask 261120
    %v96 = vsel %vm94, %v74, 0
    %v99 = vsel %vm94, %v75, 0
    %v102 = vsel %vm94, %v76, 0
    %v105 = vsel %vm94, %v77, 0
    %v108 = vsel %vm94, %v78, 0
    %v111 = vsel %vm94, %v79, 0
    %v114 = vsel %vm94, %v80, 0
    %v117 = vsel %vm94, %v81, 0
    %119 = vmatpush.bf16.msra.mxu0 0
    %120 = vmatpush.bf16.msra.mxu0 0
    %121 = vmatpush.bf16.msra.mxu0 0
    %122 = vmatpush.bf16.msra.mxu0 0
    %123 = vmatpush.bf16.msra.mxu0 0
    %124 = vmatpush.bf16.msra.mxu0 0
    %125 = vmatpush.bf16.msra.mxu0 %v91
    %126 = vmatpush.bf16.msra.mxu0 %v90
    %127 = vmatmul.bf16.gmra.mxu0 %v96
    %v128 = vpop.f32.mrf.mxu0
    %v129 = vadd.f32 0.0, %v128
    %v130 = vpop.f32.mrf.mxu0
    %v131 = vadd.f32 0.0, %v130
    %132 = vmatmul.bf16.gmra.mxu0 %v99
    %v133 = vpop.f32.mrf.mxu0
    %v134 = vadd.f32 0.0, %v133
    %v135 = vpop.f32.mrf.mxu0
    %v136 = vadd.f32 0.0, %v135
    %137 = vmatmul.bf16.gmra.mxu0 %v102
    %v138 = vpop.f32.mrf.mxu0
    %v139 = vadd.f32 0.0, %v138
    %v140 = vpop.f32.mrf.mxu0
    %v141 = vadd.f32 0.0, %v140
    %142 = vmatmul.bf16.gmra.mxu0 %v105
    %v143 = vpop.f32.mrf.mxu0
    %v144 = vadd.f32 0.0, %v143
    %v145 = vpop.f32.mrf.mxu0
    %v146 = vadd.f32 0.0, %v145
    %147 = vmatmul.bf16.gmra.mxu0 %v108
    %v148 = vpop.f32.mrf.mxu0
    %v149 = vadd.f32 0.0, %v148
    %v150 = vpop.f32.mrf.mxu0
    %v151 = vadd.f32 0.0, %v150
    %152 = vmatmul.bf16.gmra.mxu0 %v111
    %v153 = vpop.f32.mrf.mxu0
    %v154 = vadd.f32 0.0, %v153
    %v155 = vpop.f32.mrf.mxu0
    %v156 = vadd.f32 0.0, %v155
    %157 = vmatmul.bf16.gmra.mxu0 %v114
    %v158 = vpop.f32.mrf.mxu0
    %v159 = vadd.f32 0.0, %v158
    %v160 = vpop.f32.mrf.mxu0
    %v161 = vadd.f32 0.0, %v160
    %162 = vmatmul.bf16.gmra.mxu0 %v117
    %v163 = vpop.f32.mrf.mxu0
    %v164 = vadd.f32 0.0, %v163
    %v165 = vpop.f32.mrf.mxu0
    %v166 = vadd.f32 0.0, %v165
    %167 = vdwg.mxu0
    %v168 = vmax.f32 %v129, 0.0
    %v169 = vmax.f32 %v131, 0.0
    %v170 = vmax.f32 %v134, 0.0
    %v171 = vmax.f32 %v136, 0.0
    %v172 = vmax.f32 %v139, 0.0
    %v173 = vmax.f32 %v141, 0.0
    %v174 = vmax.f32 %v144, 0.0
    %v175 = vmax.f32 %v146, 0.0
    %v176 = vmax.f32 %v149, 0.0
    %v177 = vmax.f32 %v151, 0.0
    %v178 = vmax.f32 %v154, 0.0
    %v179 = vmax.f32 %v156, 0.0
    %v180 = vmax.f32 %v159, 0.0
    %v181 = vmax.f32 %v161, 0.0
    %v182 = vmax.f32 %v164, 0.0
    %v183 = vmax.f32 %v166, 0.0
    %v184 = vpack.c.bf16 %v169, %v168
    %v185 = vpack.c.bf16 %v171, %v170
    %v186 = vpack.c.bf16 %v173, %v172
    %v187 = vpack.c.bf16 %v175, %v174
    %v188 = vpack.c.bf16 %v177, %v176
    %v189 = vpack.c.bf16 %v179, %v178
    %v190 = vpack.c.bf16 %v181, %v180
    %v191 = vpack.c.bf16 %v183, %v182
    %v192 = vld [vmem:[%s2] sm:$0xf]
    %v193 = vld [vmem:[%s2 + $0x4] sm:$0xf]
    %v194 = vld [vmem:[%s2 + $0x8] sm:$0xf]
    %v195 = vld [vmem:[%s2 + $0xc] sm:$0xf]
    %v196 = vld [vmem:[%s3] sm:$0x1]
    %v198 = vperm.slane %v196, 0
    %v204 = vunpack.c.l.b16 %v192
    %v205 = vunpack.c.l.b16 %v193
    %v206 = vunpack.c.l.b16 %v194
    %v207 = vunpack.c.l.b16 %v195
    %v208 = vpack.c.b16 %v205, %v204
    %v209 = vpack.c.b16 %v207, %v206
    %v213 = vsel %vm94, %v184, 0
    %v216 = vsel %vm94, %v185, 0
    %v219 = vsel %vm94, %v186, 0
    %v222 = vsel %vm94, %v187, 0
    %v225 = vsel %vm94, %v188, 0
    %v228 = vsel %vm94, %v189, 0
    %v231 = vsel %vm94, %v190, 0
    %v234 = vsel %vm94, %v191, 0
    %236 = vmatpush.bf16.msra.mxu0 0
    %237 = vmatpush.bf16.msra.mxu0 0
    %238 = vmatpush.bf16.msra.mxu0 0
    %239 = vmatpush.bf16.msra.mxu0 0
    %240 = vmatpush.bf16.msra.mxu0 0
    %241 = vmatpush.bf16.msra.mxu0 0
    %242 = vmatpush.bf16.msra.mxu0 %v209
    %243 = vmatpush.bf16.msra.mxu0 %v208
    %244 = vmatmul.bf16.gmra.mxu0 %v213
    %v245 = vpop.f32.mrf.mxu0
    %v246 = vadd.f32 %v198, %v245
    %v247 = vpop.f32.mrf.mxu0
    %v248 = vadd.f32 %v198, %v247
    %249 = vmatmul.bf16.gmra.mxu0 %v216
    %v250 = vpop.f32.mrf.mxu0
    %v251 = vadd.f32 %v198, %v250
    %v252 = vpop.f32.mrf.mxu0
    %v253 = vadd.f32 %v198, %v252
    %254 = vmatmul.bf16.gmra.mxu0 %v219
    %v255 = vpop.f32.mrf.mxu0
    %v256 = vadd.f32 %v198, %v255
    %v257 = vpop.f32.mrf.mxu0
    %v258 = vadd.f32 %v198, %v257
    %259 = vmatmul.bf16.gmra.mxu0 %v222
    %v260 = vpop.f32.mrf.mxu0
    %v261 = vadd.f32 %v198, %v260
    %v262 = vpop.f32.mrf.mxu0
    %v263 = vadd.f32 %v198, %v262
    %264 = vmatmul.bf16.gmra.mxu0 %v225
    %v265 = vpop.f32.mrf.mxu0
    %v266 = vadd.f32 %v198, %v265
    %v267 = vpop.f32.mrf.mxu0
    %v268 = vadd.f32 %v198, %v267
    %269 = vmatmul.bf16.gmra.mxu0 %v228
    %v270 = vpop.f32.mrf.mxu0
    %v271 = vadd.f32 %v198, %v270
    %v272 = vpop.f32.mrf.mxu0
    %v273 = vadd.f32 %v198, %v272
    %274 = vmatmul.bf16.gmra.mxu0 %v231
    %v275 = vpop.f32.mrf.mxu0
    %v276 = vadd.f32 %v198, %v275
    %v277 = vpop.f32.mrf.mxu0
    %v278 = vadd.f32 %v198, %v277
    %279 = vmatmul.bf16.gmra.mxu0 %v234
    %v280 = vpop.f32.mrf.mxu0
    %v281 = vadd.f32 %v198, %v280
    %v282 = vpop.f32.mrf.mxu0
    %v283 = vadd.f32 %v198, %v282
    %284 = vdwg.mxu0
    %v285 = vld [vmem:[%s4] sm:$0xff]
    %v286 = vld [vmem:[%s4 + $0x8] sm:$0xff]
    %v287 = vld [vmem:[%s4 + $0x10] sm:$0xff]
    %v288 = vld [vmem:[%s4 + $0x18] sm:$0xff]
    %v289 = vld [vmem:[%s4 + $0x20] sm:$0xff]
    %v290 = vld [vmem:[%s4 + $0x28] sm:$0xff]
    %v291 = vld [vmem:[%s4 + $0x30] sm:$0xff]
    %v292 = vld [vmem:[%s4 + $0x38] sm:$0xff]
    %v293 = vld [vmem:[%s4 + $0x40] sm:$0xff]
    %v294 = vld [vmem:[%s4 + $0x48] sm:$0xff]
    %v295 = vld [vmem:[%s4 + $0x50] sm:$0xff]
    %v296 = vld [vmem:[%s4 + $0x58] sm:$0xff]
    %v297 = vld [vmem:[%s4 + $0x60] sm:$0xff]
    %v298 = vld [vmem:[%s4 + $0x68] sm:$0xff]
    %v299 = vld [vmem:[%s4 + $0x70] sm:$0xff]
    %v300 = vld [vmem:[%s4 + $0x78] sm:$0xff]
    %v301 = vlaneseq
    %v302 = vand.u32 %v301, 127
    %vm303 = vcmp.lt.s32.totalorder %v302, 8
    %v304 = vsel %vm303, 1, 0
    %v305 = vcvt.s32.f32 %v304
    %vm306 = vcmp.ge.s32.totalorder %v302, 8
    %vm307 = vcmp.lt.s32.totalorder %v302, 12
    %vm308 = vmand %vm306, %vm307
    %v309 = vsel %vm308, 1, 0
    %v310 = vcvt.s32.f32 %v309
    %vm311 = vcmp.eq.s32.totalorder %v302, 12
    %v312 = vsel %vm311, 1, 0
    %v313 = vcvt.s32.f32 %v312
    %v314 = vmul.f32 %v285, %v313
    %v315 = vmul.f32 %v286, %v313
    %v316 = vmul.f32 %v287, %v313
    %v317 = vmul.f32 %v288, %v313
    %v318 = vmul.f32 %v289, %v313
    %v319 = vmul.f32 %v290, %v313
    %v320 = vmul.f32 %v291, %v313
    %v321 = vmul.f32 %v292, %v313
    %v322 = vmul.f32 %v293, %v313
    %v323 = vmul.f32 %v294, %v313
    %v324 = vmul.f32 %v295, %v313
    %v325 = vmul.f32 %v296, %v313
    %v326 = vmul.f32 %v297, %v313
    %v327 = vmul.f32 %v298, %v313
    %v328 = vmul.f32 %v299, %v313
    %v329 = vmul.f32 %v300, %v313
    %vm330 = vcmask 130048
    %v331 = vsel %vm330, %v314, 0.0
    %332 = vadd.xlane.f32.xlu0 %v331
    %v333 = vpop.xlane.xlu0 %332
    %v334 = vsel %vm330, %v315, 0.0
    %335 = vadd.xlane.f32.xlu0 %v334
    %v336 = vpop.xlane.xlu0 %335
    %v337 = vsel %vm330, %v316, 0.0
    %338 = vadd.xlane.f32.xlu0 %v337
    %v339 = vpop.xlane.xlu0 %338
    %v340 = vsel %vm330, %v317, 0.0
    %341 = vadd.xlane.f32.xlu0 %v340
    %v342 = vpop.xlane.xlu0 %341
    %v343 = vsel %vm330, %v318, 0.0
    %344 = vadd.xlane.f32.xlu0 %v343
    %v345 = vpop.xlane.xlu0 %344
    %v346 = vsel %vm330, %v319, 0.0
    %347 = vadd.xlane.f32.xlu0 %v346
    %v348 = vpop.xlane.xlu0 %347
    %v349 = vsel %vm330, %v320, 0.0
    %350 = vadd.xlane.f32.xlu0 %v349
    %v351 = vpop.xlane.xlu0 %350
    %v352 = vsel %vm330, %v321, 0.0
    %353 = vadd.xlane.f32.xlu0 %v352
    %v354 = vpop.xlane.xlu0 %353
    %v355 = vsel %vm330, %v322, 0.0
    %356 = vadd.xlane.f32.xlu0 %v355
    %v357 = vpop.xlane.xlu0 %356
    %v358 = vsel %vm330, %v323, 0.0
    %359 = vadd.xlane.f32.xlu0 %v358
    %v360 = vpop.xlane.xlu0 %359
    %v361 = vsel %vm330, %v324, 0.0
    %362 = vadd.xlane.f32.xlu0 %v361
    %v363 = vpop.xlane.xlu0 %362
    %v364 = vsel %vm330, %v325, 0.0
    %365 = vadd.xlane.f32.xlu0 %v364
    %v366 = vpop.xlane.xlu0 %365
    %v367 = vsel %vm330, %v326, 0.0
    %368 = vadd.xlane.f32.xlu0 %v367
    %v369 = vpop.xlane.xlu0 %368
    %v370 = vsel %vm330, %v327, 0.0
    %371 = vadd.xlane.f32.xlu0 %v370
    %v372 = vpop.xlane.xlu0 %371
    %v373 = vsel %vm330, %v328, 0.0
    %374 = vadd.xlane.f32.xlu0 %v373
    %v375 = vpop.xlane.xlu0 %374
    %v376 = vsel %vm330, %v329, 0.0
    %377 = vadd.xlane.f32.xlu0 %v376
    %v378 = vpop.xlane.xlu0 %377
    %vm379 = vcmask 7168
    %v380 = vsel %vm379, %v333, 0.0
    %v381 = vsel %vm379, %v336, 0.0
    %v382 = vadd.f32 %v380, %v381
    %v383 = vsel %vm379, %v339, 0.0
    %v384 = vadd.f32 %v382, %v383
    %v385 = vsel %vm379, %v342, 0.0
    %v386 = vadd.f32 %v384, %v385
    %v387 = vsel %vm379, %v345, 0.0
    %v388 = vadd.f32 %v386, %v387
    %v389 = vsel %vm379, %v348, 0.0
    %v390 = vadd.f32 %v388, %v389
    %v391 = vsel %vm379, %v351, 0.0
    %v392 = vadd.f32 %v390, %v391
    %v393 = vsel %vm379, %v354, 0.0
    %v394 = vadd.f32 %v392, %v393
    %v395 = vsel %vm379, %v357, 0.0
    %v396 = vadd.f32 %v394, %v395
    %v397 = vsel %vm379, %v360, 0.0
    %v398 = vadd.f32 %v396, %v397
    %v399 = vsel %vm379, %v363, 0.0
    %v400 = vadd.f32 %v398, %v399
    %v401 = vsel %vm379, %v366, 0.0
    %v402 = vadd.f32 %v400, %v401
    %v403 = vsel %vm379, %v369, 0.0
    %v404 = vadd.f32 %v402, %v403
    %v405 = vsel %vm379, %v372, 0.0
    %v406 = vadd.f32 %v404, %v405
    %v407 = vsel %vm379, %v375, 0.0
    %v408 = vadd.f32 %v406, %v407
    %v409 = vsel %vm379, %v378, 0.0
    %v410 = vadd.f32 %v408, %v409
    %411 = vadd.xlane.f32.xlu0 %v410
    %v412 = vpop.xlane.xlu0 %411
    %v413 = vrot.slane %v412, 4
    %v414 = vadd.f32 %v412, %v413
    %v415 = vrot.slane %v414, 2
    %v416 = vadd.f32 %v414, %v415
    %v417 = vrot.slane %v416, 1
    %v418 = vadd.f32 %v416, %v417
    %s419 = vtos %v418
    %s420 = smax.f32 %s419, 1.0
    %v421 = vmul.f32 %v285, %v305
    %v422 = vmul.f32 %v286, %v305
    %v423 = vmul.f32 %v287, %v305
    %v424 = vmul.f32 %v288, %v305
    %v425 = vmul.f32 %v289, %v305
    %v426 = vmul.f32 %v290, %v305
    %v427 = vmul.f32 %v291, %v305
    %v428 = vmul.f32 %v292, %v305
    %v429 = vmul.f32 %v293, %v305
    %v430 = vmul.f32 %v294, %v305
    %v431 = vmul.f32 %v295, %v305
    %v432 = vmul.f32 %v296, %v305
    %v433 = vmul.f32 %v297, %v305
    %v434 = vmul.f32 %v298, %v305
    %v435 = vmul.f32 %v299, %v305
    %v436 = vmul.f32 %v300, %v305
    %v437 = vand.u32 2147483647, %v246
    %v438 = vand.u32 2147483647, %v248
    %v439 = vand.u32 2147483647, %v251
    %v440 = vand.u32 2147483647, %v253
    %v441 = vand.u32 2147483647, %v256
    %v442 = vand.u32 2147483647, %v258
    %v443 = vand.u32 2147483647, %v261
    %v444 = vand.u32 2147483647, %v263
    %v445 = vand.u32 2147483647, %v266
    %v446 = vand.u32 2147483647, %v268
    %v447 = vand.u32 2147483647, %v271
    %v448 = vand.u32 2147483647, %v273
    %v449 = vand.u32 2147483647, %v276
    %v450 = vand.u32 2147483647, %v278
    %v451 = vand.u32 2147483647, %v281
    %v452 = vand.u32 2147483647, %v283
    %v453 = vsub.f32 0.0, %v437
    %v454 = vsub.f32 0.0, %v438
    %v455 = vsub.f32 0.0, %v439
    %v456 = vsub.f32 0.0, %v440
    %v457 = vsub.f32 0.0, %v441
    %v458 = vsub.f32 0.0, %v442
    %v459 = vsub.f32 0.0, %v443
    %v460 = vsub.f32 0.0, %v444
    %v461 = vsub.f32 0.0, %v445
    %v462 = vsub.f32 0.0, %v446
    %v463 = vsub.f32 0.0, %v447
    %v464 = vsub.f32 0.0, %v448
    %v465 = vsub.f32 0.0, %v449
    %v466 = vsub.f32 0.0, %v450
    %v467 = vsub.f32 0.0, %v451
    %v468 = vsub.f32 0.0, %v452
    %v469 = vmul.f32 %v453, 1.442695
    %v470 = vpow.pop %v469
    %v471 = vmul.f32 %v454, 1.442695
    %v472 = vpow.pop %v471
    %v473 = vmul.f32 %v455, 1.442695
    %v474 = vpow.pop %v473
    %v475 = vmul.f32 %v456, 1.442695
    %v476 = vpow.pop %v475
    %v477 = vmul.f32 %v457, 1.442695
    %v478 = vpow.pop %v477
    %v479 = vmul.f32 %v458, 1.442695
    %v480 = vpow.pop %v479
    %v481 = vmul.f32 %v459, 1.442695
    %v482 = vpow.pop %v481
    %v483 = vmul.f32 %v460, 1.442695
    %v484 = vpow.pop %v483
    %v485 = vmul.f32 %v461, 1.442695
    %v486 = vpow.pop %v485
    %v487 = vmul.f32 %v462, 1.442695
    %v488 = vpow.pop %v487
    %v489 = vmul.f32 %v463, 1.442695
    %v490 = vpow.pop %v489
    %v491 = vmul.f32 %v464, 1.442695
    %v492 = vpow.pop %v491
    %v493 = vmul.f32 %v465, 1.442695
    %v494 = vpow.pop %v493
    %v495 = vmul.f32 %v466, 1.442695
    %v496 = vpow.pop %v495
    %v497 = vmul.f32 %v467, 1.442695
    %v498 = vpow.pop %v497
    %v499 = vmul.f32 %v468, 1.442695
    %v500 = vpow.pop %v499
    %v501 = vadd.f32 %v470, 1.0
    %v502 = vadd.f32 %v472, 1.0
    %v503 = vadd.f32 %v474, 1.0
    %v504 = vadd.f32 %v476, 1.0
    %v505 = vadd.f32 %v478, 1.0
    %v506 = vadd.f32 %v480, 1.0
    %v507 = vadd.f32 %v482, 1.0
    %v508 = vadd.f32 %v484, 1.0
    %v509 = vadd.f32 %v486, 1.0
    %v510 = vadd.f32 %v488, 1.0
    %v511 = vadd.f32 %v490, 1.0
    %v512 = vadd.f32 %v492, 1.0
    %v513 = vadd.f32 %v494, 1.0
    %v514 = vadd.f32 %v496, 1.0
    %v515 = vadd.f32 %v498, 1.0
    %v516 = vadd.f32 %v500, 1.0
    %v517 = vrcp.pop %v501
    %v518 = vmul.f32 %v501, %v517
    %v519 = vsub.f32 1.0, %v518
    %v520 = vmul.f32 %v517, %v519
    %v521 = vadd.f32 %v517, %v520
    %vm522 = vweird.f32 %v501
    %vm523 = vweird.f32 %v517
    %vm524 = vmor %vm522, %vm523
    %v525 = vsel %vm524, %v517, %v521
    %v526 = vand.u32 2147483647, %v501
    %vm527 = vcmp.eq.f32.partialorder %v526, 8.507059e+37
    %v528 = vand.u32 %v501, 2147483648
    %v529 = vor.u32 1.1754944e-38, %v528
    %v530 = vsel %vm527, %v529, %v525
    %v531 = vmul.f32 1.0, %v530
    %v532 = vrcp.pop %v502
    %v533 = vmul.f32 %v502, %v532
    %v534 = vsub.f32 1.0, %v533
    %v535 = vmul.f32 %v532, %v534
    %v536 = vadd.f32 %v532, %v535
    %vm537 = vweird.f32 %v502
    %vm538 = vweird.f32 %v532
    %vm539 = vmor %vm537, %vm538
    %v540 = vsel %vm539, %v532, %v536
    %v541 = vand.u32 2147483647, %v502
    %vm542 = vcmp.eq.f32.partialorder %v541, 8.507059e+37
    %v543 = vand.u32 %v502, 2147483648
    %v544 = vor.u32 1.1754944e-38, %v543
    %v545 = vsel %vm542, %v544, %v540
    %v546 = vmul.f32 1.0, %v545
    %v547 = vrcp.pop %v503
    %v548 = vmul.f32 %v503, %v547
    %v549 = vsub.f32 1.0, %v548
    %v550 = vmul.f32 %v547, %v549
    %v551 = vadd.f32 %v547, %v550
    %vm552 = vweird.f32 %v503
    %vm553 = vweird.f32 %v547
    %vm554 = vmor %vm552, %vm553
    %v555 = vsel %vm554, %v547, %v551
    %v556 = vand.u32 2147483647, %v503
    %vm557 = vcmp.eq.f32.partialorder %v556, 8.507059e+37
    %v558 = vand.u32 %v503, 2147483648
    %v559 = vor.u32 1.1754944e-38, %v558
    %v560 = vsel %vm557, %v559, %v555
    %v561 = vmul.f32 1.0, %v560
    %v562 = vrcp.pop %v504
    %v563 = vmul.f32 %v504, %v562
    %v564 = vsub.f32 1.0, %v563
    %v565 = vmul.f32 %v562, %v564
    %v566 = vadd.f32 %v562, %v565
    %vm567 = vweird.f32 %v504
    %vm568 = vweird.f32 %v562
    %vm569 = vmor %vm567, %vm568
    %v570 = vsel %vm569, %v562, %v566
    %v571 = vand.u32 2147483647, %v504
    %vm572 = vcmp.eq.f32.partialorder %v571, 8.507059e+37
    %v573 = vand.u32 %v504, 2147483648
    %v574 = vor.u32 1.1754944e-38, %v573
    %v575 = vsel %vm572, %v574, %v570
    %v576 = vmul.f32 1.0, %v575
    %v577 = vrcp.pop %v505
    %v578 = vmul.f32 %v505, %v577
    %v579 = vsub.f32 1.0, %v578
    %v580 = vmul.f32 %v577, %v579
    %v581 = vadd.f32 %v577, %v580
    %vm582 = vweird.f32 %v505
    %vm583 = vweird.f32 %v577
    %vm584 = vmor %vm582, %vm583
    %v585 = vsel %vm584, %v577, %v581
    %v586 = vand.u32 2147483647, %v505
    %vm587 = vcmp.eq.f32.partialorder %v586, 8.507059e+37
    %v588 = vand.u32 %v505, 2147483648
    %v589 = vor.u32 1.1754944e-38, %v588
    %v590 = vsel %vm587, %v589, %v585
    %v591 = vmul.f32 1.0, %v590
    %v592 = vrcp.pop %v506
    %v593 = vmul.f32 %v506, %v592
    %v594 = vsub.f32 1.0, %v593
    %v595 = vmul.f32 %v592, %v594
    %v596 = vadd.f32 %v592, %v595
    %vm597 = vweird.f32 %v506
    %vm598 = vweird.f32 %v592
    %vm599 = vmor %vm597, %vm598
    %v600 = vsel %vm599, %v592, %v596
    %v601 = vand.u32 2147483647, %v506
    %vm602 = vcmp.eq.f32.partialorder %v601, 8.507059e+37
    %v603 = vand.u32 %v506, 2147483648
    %v604 = vor.u32 1.1754944e-38, %v603
    %v605 = vsel %vm602, %v604, %v600
    %v606 = vmul.f32 1.0, %v605
    %v607 = vrcp.pop %v507
    %v608 = vmul.f32 %v507, %v607
    %v609 = vsub.f32 1.0, %v608
    %v610 = vmul.f32 %v607, %v609
    %v611 = vadd.f32 %v607, %v610
    %vm612 = vweird.f32 %v507
    %vm613 = vweird.f32 %v607
    %vm614 = vmor %vm612, %vm613
    %v615 = vsel %vm614, %v607, %v611
    %v616 = vand.u32 2147483647, %v507
    %vm617 = vcmp.eq.f32.partialorder %v616, 8.507059e+37
    %v618 = vand.u32 %v507, 2147483648
    %v619 = vor.u32 1.1754944e-38, %v618
    %v620 = vsel %vm617, %v619, %v615
    %v621 = vmul.f32 1.0, %v620
    %v622 = vrcp.pop %v508
    %v623 = vmul.f32 %v508, %v622
    %v624 = vsub.f32 1.0, %v623
    %v625 = vmul.f32 %v622, %v624
    %v626 = vadd.f32 %v622, %v625
    %vm627 = vweird.f32 %v508
    %vm628 = vweird.f32 %v622
    %vm629 = vmor %vm627, %vm628
    %v630 = vsel %vm629, %v622, %v626
    %v631 = vand.u32 2147483647, %v508
    %vm632 = vcmp.eq.f32.partialorder %v631, 8.507059e+37
    %v633 = vand.u32 %v508, 2147483648
    %v634 = vor.u32 1.1754944e-38, %v633
    %v635 = vsel %vm632, %v634, %v630
    %v636 = vmul.f32 1.0, %v635
    %v637 = vrcp.pop %v509
    %v638 = vmul.f32 %v509, %v637
    %v639 = vsub.f32 1.0, %v638
    %v640 = vmul.f32 %v637, %v639
    %v641 = vadd.f32 %v637, %v640
    %vm642 = vweird.f32 %v509
    %vm643 = vweird.f32 %v637
    %vm644 = vmor %vm642, %vm643
    %v645 = vsel %vm644, %v637, %v641
    %v646 = vand.u32 2147483647, %v509
    %vm647 = vcmp.eq.f32.partialorder %v646, 8.507059e+37
    %v648 = vand.u32 %v509, 2147483648
    %v649 = vor.u32 1.1754944e-38, %v648
    %v650 = vsel %vm647, %v649, %v645
    %v651 = vmul.f32 1.0, %v650
    %v652 = vrcp.pop %v510
    %v653 = vmul.f32 %v510, %v652
    %v654 = vsub.f32 1.0, %v653
    %v655 = vmul.f32 %v652, %v654
    %v656 = vadd.f32 %v652, %v655
    %vm657 = vweird.f32 %v510
    %vm658 = vweird.f32 %v652
    %vm659 = vmor %vm657, %vm658
    %v660 = vsel %vm659, %v652, %v656
    %v661 = vand.u32 2147483647, %v510
    %vm662 = vcmp.eq.f32.partialorder %v661, 8.507059e+37
    %v663 = vand.u32 %v510, 2147483648
    %v664 = vor.u32 1.1754944e-38, %v663
    %v665 = vsel %vm662, %v664, %v660
    %v666 = vmul.f32 1.0, %v665
    %v667 = vrcp.pop %v511
    %v668 = vmul.f32 %v511, %v667
    %v669 = vsub.f32 1.0, %v668
    %v670 = vmul.f32 %v667, %v669
    %v671 = vadd.f32 %v667, %v670
    %vm672 = vweird.f32 %v511
    %vm673 = vweird.f32 %v667
    %vm674 = vmor %vm672, %vm673
    %v675 = vsel %vm674, %v667, %v671
    %v676 = vand.u32 2147483647, %v511
    %vm677 = vcmp.eq.f32.partialorder %v676, 8.507059e+37
    %v678 = vand.u32 %v511, 2147483648
    %v679 = vor.u32 1.1754944e-38, %v678
    %v680 = vsel %vm677, %v679, %v675
    %v681 = vmul.f32 1.0, %v680
    %v682 = vrcp.pop %v512
    %v683 = vmul.f32 %v512, %v682
    %v684 = vsub.f32 1.0, %v683
    %v685 = vmul.f32 %v682, %v684
    %v686 = vadd.f32 %v682, %v685
    %vm687 = vweird.f32 %v512
    %vm688 = vweird.f32 %v682
    %vm689 = vmor %vm687, %vm688
    %v690 = vsel %vm689, %v682, %v686
    %v691 = vand.u32 2147483647, %v512
    %vm692 = vcmp.eq.f32.partialorder %v691, 8.507059e+37
    %v693 = vand.u32 %v512, 2147483648
    %v694 = vor.u32 1.1754944e-38, %v693
    %v695 = vsel %vm692, %v694, %v690
    %v696 = vmul.f32 1.0, %v695
    %v697 = vrcp.pop %v513
    %v698 = vmul.f32 %v513, %v697
    %v699 = vsub.f32 1.0, %v698
    %v700 = vmul.f32 %v697, %v699
    %v701 = vadd.f32 %v697, %v700
    %vm702 = vweird.f32 %v513
    %vm703 = vweird.f32 %v697
    %vm704 = vmor %vm702, %vm703
    %v705 = vsel %vm704, %v697, %v701
    %v706 = vand.u32 2147483647, %v513
    %vm707 = vcmp.eq.f32.partialorder %v706, 8.507059e+37
    %v708 = vand.u32 %v513, 2147483648
    %v709 = vor.u32 1.1754944e-38, %v708
    %v710 = vsel %vm707, %v709, %v705
    %v711 = vmul.f32 1.0, %v710
    %v712 = vrcp.pop %v514
    %v713 = vmul.f32 %v514, %v712
    %v714 = vsub.f32 1.0, %v713
    %v715 = vmul.f32 %v712, %v714
    %v716 = vadd.f32 %v712, %v715
    %vm717 = vweird.f32 %v514
    %vm718 = vweird.f32 %v712
    %vm719 = vmor %vm717, %vm718
    %v720 = vsel %vm719, %v712, %v716
    %v721 = vand.u32 2147483647, %v514
    %vm722 = vcmp.eq.f32.partialorder %v721, 8.507059e+37
    %v723 = vand.u32 %v514, 2147483648
    %v724 = vor.u32 1.1754944e-38, %v723
    %v725 = vsel %vm722, %v724, %v720
    %v726 = vmul.f32 1.0, %v725
    %v727 = vrcp.pop %v515
    %v728 = vmul.f32 %v515, %v727
    %v729 = vsub.f32 1.0, %v728
    %v730 = vmul.f32 %v727, %v729
    %v731 = vadd.f32 %v727, %v730
    %vm732 = vweird.f32 %v515
    %vm733 = vweird.f32 %v727
    %vm734 = vmor %vm732, %vm733
    %v735 = vsel %vm734, %v727, %v731
    %v736 = vand.u32 2147483647, %v515
    %vm737 = vcmp.eq.f32.partialorder %v736, 8.507059e+37
    %v738 = vand.u32 %v515, 2147483648
    %v739 = vor.u32 1.1754944e-38, %v738
    %v740 = vsel %vm737, %v739, %v735
    %v741 = vmul.f32 1.0, %v740
    %v742 = vrcp.pop %v516
    %v743 = vmul.f32 %v516, %v742
    %v744 = vsub.f32 1.0, %v743
    %v745 = vmul.f32 %v742, %v744
    %v746 = vadd.f32 %v742, %v745
    %vm747 = vweird.f32 %v516
    %vm748 = vweird.f32 %v742
    %vm749 = vmor %vm747, %vm748
    %v750 = vsel %vm749, %v742, %v746
    %v751 = vand.u32 2147483647, %v516
    %vm752 = vcmp.eq.f32.partialorder %v751, 8.507059e+37
    %v753 = vand.u32 %v516, 2147483648
    %v754 = vor.u32 1.1754944e-38, %v753
    %v755 = vsel %vm752, %v754, %v750
    %v756 = vmul.f32 1.0, %v755
    %vm757 = vcmp.ge.f32.partialorder %v246, 0.0
    %vm758 = vcmp.ge.f32.partialorder %v248, 0.0
    %vm759 = vcmp.ge.f32.partialorder %v251, 0.0
    %vm760 = vcmp.ge.f32.partialorder %v253, 0.0
    %vm761 = vcmp.ge.f32.partialorder %v256, 0.0
    %vm762 = vcmp.ge.f32.partialorder %v258, 0.0
    %vm763 = vcmp.ge.f32.partialorder %v261, 0.0
    %vm764 = vcmp.ge.f32.partialorder %v263, 0.0
    %vm765 = vcmp.ge.f32.partialorder %v266, 0.0
    %vm766 = vcmp.ge.f32.partialorder %v268, 0.0
    %vm767 = vcmp.ge.f32.partialorder %v271, 0.0
    %vm768 = vcmp.ge.f32.partialorder %v273, 0.0
    %vm769 = vcmp.ge.f32.partialorder %v276, 0.0
    %vm770 = vcmp.ge.f32.partialorder %v278, 0.0
    %vm771 = vcmp.ge.f32.partialorder %v281, 0.0
    %vm772 = vcmp.ge.f32.partialorder %v283, 0.0
    %v773 = vmul.f32 %v470, %v531
    %v774 = vmul.f32 %v472, %v546
    %v775 = vmul.f32 %v474, %v561
    %v776 = vmul.f32 %v476, %v576
    %v777 = vmul.f32 %v478, %v591
    %v778 = vmul.f32 %v480, %v606
    %v779 = vmul.f32 %v482, %v621
    %v780 = vmul.f32 %v484, %v636
    %v781 = vmul.f32 %v486, %v651
    %v782 = vmul.f32 %v488, %v666
    %v783 = vmul.f32 %v490, %v681
    %v784 = vmul.f32 %v492, %v696
    %v785 = vmul.f32 %v494, %v711
    %v786 = vmul.f32 %v496, %v726
    %v787 = vmul.f32 %v498, %v741
    %v788 = vmul.f32 %v500, %v756
    %v789 = vsel %vm757, %v531, %v773
    %v790 = vsel %vm758, %v546, %v774
    %v791 = vsel %vm759, %v561, %v775
    %v792 = vsel %vm760, %v576, %v776
    %v793 = vsel %vm761, %v591, %v777
    %v794 = vsel %vm762, %v606, %v778
    %v795 = vsel %vm763, %v621, %v779
    %v796 = vsel %vm764, %v636, %v780
    %v797 = vsel %vm765, %v651, %v781
    %v798 = vsel %vm766, %v666, %v782
    %v799 = vsel %vm767, %v681, %v783
    %v800 = vsel %vm768, %v696, %v784
    %v801 = vsel %vm769, %v711, %v785
    %v802 = vsel %vm770, %v726, %v786
    %v803 = vsel %vm771, %v741, %v787
    %v804 = vsel %vm772, %v756, %v788
    %v805 = vmax.f32 %v246, 0.0
    %v806 = vmax.f32 %v248, 0.0
    %v807 = vmax.f32 %v251, 0.0
    %v808 = vmax.f32 %v253, 0.0
    %v809 = vmax.f32 %v256, 0.0
    %v810 = vmax.f32 %v258, 0.0
    %v811 = vmax.f32 %v261, 0.0
    %v812 = vmax.f32 %v263, 0.0
    %v813 = vmax.f32 %v266, 0.0
    %v814 = vmax.f32 %v268, 0.0
    %v815 = vmax.f32 %v271, 0.0
    %v816 = vmax.f32 %v273, 0.0
    %v817 = vmax.f32 %v276, 0.0
    %v818 = vmax.f32 %v278, 0.0
    %v819 = vmax.f32 %v281, 0.0
    %v820 = vmax.f32 %v283, 0.0
    %v821 = vmul.f32 %v246, %v421
    %v822 = vmul.f32 %v248, %v422
    %v823 = vmul.f32 %v251, %v423
    %v824 = vmul.f32 %v253, %v424
    %v825 = vmul.f32 %v256, %v425
    %v826 = vmul.f32 %v258, %v426
    %v827 = vmul.f32 %v261, %v427
    %v828 = vmul.f32 %v263, %v428
    %v829 = vmul.f32 %v266, %v429
    %v830 = vmul.f32 %v268, %v430
    %v831 = vmul.f32 %v271, %v431
    %v832 = vmul.f32 %v273, %v432
    %v833 = vmul.f32 %v276, %v433
    %v834 = vmul.f32 %v278, %v434
    %v835 = vmul.f32 %v281, %v435
    %v836 = vmul.f32 %v283, %v436
    %v837 = vsub.f32 %v805, %v821
    %v838 = vsub.f32 %v806, %v822
    %v839 = vsub.f32 %v807, %v823
    %v840 = vsub.f32 %v808, %v824
    %v841 = vsub.f32 %v809, %v825
    %v842 = vsub.f32 %v810, %v826
    %v843 = vsub.f32 %v811, %v827
    %v844 = vsub.f32 %v812, %v828
    %v845 = vsub.f32 %v813, %v829
    %v846 = vsub.f32 %v814, %v830
    %v847 = vsub.f32 %v815, %v831
    %v848 = vsub.f32 %v816, %v832
    %v849 = vsub.f32 %v817, %v833
    %v850 = vsub.f32 %v818, %v834
    %v851 = vsub.f32 %v819, %v835
    %v852 = vsub.f32 %v820, %v836
    %v853 = vlog2.pop %v501
    %v854 = vmul.f32 %v853, 0.6931472
    %v855 = vlog2.pop %v502
    %v856 = vmul.f32 %v855, 0.6931472
    %v857 = vlog2.pop %v503
    %v858 = vmul.f32 %v857, 0.6931472
    %v859 = vlog2.pop %v504
    %v860 = vmul.f32 %v859, 0.6931472
    %v861 = vlog2.pop %v505
    %v862 = vmul.f32 %v861, 0.6931472
    %v863 = vlog2.pop %v506
    %v864 = vmul.f32 %v863, 0.6931472
    %v865 = vlog2.pop %v507
    %v866 = vmul.f32 %v865, 0.6931472
    %v867 = vlog2.pop %v508
    %v868 = vmul.f32 %v867, 0.6931472
    %v869 = vlog2.pop %v509
    %v870 = vmul.f32 %v869, 0.6931472
    %v871 = vlog2.pop %v510
    %v872 = vmul.f32 %v871, 0.6931472
    %v873 = vlog2.pop %v511
    %v874 = vmul.f32 %v873, 0.6931472
    %v875 = vlog2.pop %v512
    %v876 = vmul.f32 %v875, 0.6931472
    %v877 = vlog2.pop %v513
    %v878 = vmul.f32 %v877, 0.6931472
    %v879 = vlog2.pop %v514
    %v880 = vmul.f32 %v879, 0.6931472
    %v881 = vlog2.pop %v515
    %v882 = vmul.f32 %v881, 0.6931472
    %v883 = vlog2.pop %v516
    %v884 = vmul.f32 %v883, 0.6931472
    %v885 = vadd.f32 %v837, %v854
    %v886 = vadd.f32 %v838, %v856
    %v887 = vadd.f32 %v839, %v858
    %v888 = vadd.f32 %v840, %v860
    %v889 = vadd.f32 %v841, %v862
    %v890 = vadd.f32 %v842, %v864
    %v891 = vadd.f32 %v843, %v866
    %v892 = vadd.f32 %v844, %v868
    %v893 = vadd.f32 %v845, %v870
    %v894 = vadd.f32 %v846, %v872
    %v895 = vadd.f32 %v847, %v874
    %v896 = vadd.f32 %v848, %v876
    %v897 = vadd.f32 %v849, %v878
    %v898 = vadd.f32 %v850, %v880
    %v899 = vadd.f32 %v851, %v882
    %v900 = vadd.f32 %v852, %v884
    %v901 = vmul.f32 %v789, %v421
    %v902 = vmul.f32 %v790, %v422
    %v903 = vmul.f32 %v791, %v423
    %v904 = vmul.f32 %v792, %v424
    %v905 = vmul.f32 %v793, %v425
    %v906 = vmul.f32 %v794, %v426
    %v907 = vmul.f32 %v795, %v427
    %v908 = vmul.f32 %v796, %v428
    %v909 = vmul.f32 %v797, %v429
    %v910 = vmul.f32 %v798, %v430
    %v911 = vmul.f32 %v799, %v431
    %v912 = vmul.f32 %v800, %v432
    %v913 = vmul.f32 %v801, %v433
    %v914 = vmul.f32 %v802, %v434
    %v915 = vmul.f32 %v803, %v435
    %v916 = vmul.f32 %v804, %v436
    %v917 = vsub.f32 1.0, %v789
    %v918 = vsub.f32 1.0, %v790
    %v919 = vsub.f32 1.0, %v791
    %v920 = vsub.f32 1.0, %v792
    %v921 = vsub.f32 1.0, %v793
    %v922 = vsub.f32 1.0, %v794
    %v923 = vsub.f32 1.0, %v795
    %v924 = vsub.f32 1.0, %v796
    %v925 = vsub.f32 1.0, %v797
    %v926 = vsub.f32 1.0, %v798
    %v927 = vsub.f32 1.0, %v799
    %v928 = vsub.f32 1.0, %v800
    %v929 = vsub.f32 1.0, %v801
    %v930 = vsub.f32 1.0, %v802
    %v931 = vsub.f32 1.0, %v803
    %v932 = vsub.f32 1.0, %v804
    %v933 = vsub.f32 1.0, %v421
    %v934 = vsub.f32 1.0, %v422
    %v935 = vsub.f32 1.0, %v423
    %v936 = vsub.f32 1.0, %v424
    %v937 = vsub.f32 1.0, %v425
    %v938 = vsub.f32 1.0, %v426
    %v939 = vsub.f32 1.0, %v427
    %v940 = vsub.f32 1.0, %v428
    %v941 = vsub.f32 1.0, %v429
    %v942 = vsub.f32 1.0, %v430
    %v943 = vsub.f32 1.0, %v431
    %v944 = vsub.f32 1.0, %v432
    %v945 = vsub.f32 1.0, %v433
    %v946 = vsub.f32 1.0, %v434
    %v947 = vsub.f32 1.0, %v435
    %v948 = vsub.f32 1.0, %v436
    %v949 = vmul.f32 %v917, %v933
    %v950 = vmul.f32 %v918, %v934
    %v951 = vmul.f32 %v919, %v935
    %v952 = vmul.f32 %v920, %v936
    %v953 = vmul.f32 %v921, %v937
    %v954 = vmul.f32 %v922, %v938
    %v955 = vmul.f32 %v923, %v939
    %v956 = vmul.f32 %v924, %v940
    %v957 = vmul.f32 %v925, %v941
    %v958 = vmul.f32 %v926, %v942
    %v959 = vmul.f32 %v927, %v943
    %v960 = vmul.f32 %v928, %v944
    %v961 = vmul.f32 %v929, %v945
    %v962 = vmul.f32 %v930, %v946
    %v963 = vmul.f32 %v931, %v947
    %v964 = vmul.f32 %v932, %v948
    %v965 = vadd.f32 %v901, %v949
    %v966 = vadd.f32 %v902, %v950
    %v967 = vadd.f32 %v903, %v951
    %v968 = vadd.f32 %v904, %v952
    %v969 = vadd.f32 %v905, %v953
    %v970 = vadd.f32 %v906, %v954
    %v971 = vadd.f32 %v907, %v955
    %v972 = vadd.f32 %v908, %v956
    %v973 = vadd.f32 %v909, %v957
    %v974 = vadd.f32 %v910, %v958
    %v975 = vadd.f32 %v911, %v959
    %v976 = vadd.f32 %v912, %v960
    %v977 = vadd.f32 %v913, %v961
    %v978 = vadd.f32 %v914, %v962
    %v979 = vadd.f32 %v915, %v963
    %v980 = vadd.f32 %v916, %v964
    %v981 = vmul.f32 %v421, 0.25
    %v982 = vmul.f32 %v422, 0.25
    %v983 = vmul.f32 %v423, 0.25
    %v984 = vmul.f32 %v424, 0.25
    %v985 = vmul.f32 %v425, 0.25
    %v986 = vmul.f32 %v426, 0.25
    %v987 = vmul.f32 %v427, 0.25
    %v988 = vmul.f32 %v428, 0.25
    %v989 = vmul.f32 %v429, 0.25
    %v990 = vmul.f32 %v430, 0.25
    %v991 = vmul.f32 %v431, 0.25
    %v992 = vmul.f32 %v432, 0.25
    %v993 = vmul.f32 %v433, 0.25
    %v994 = vmul.f32 %v434, 0.25
    %v995 = vmul.f32 %v435, 0.25
    %v996 = vmul.f32 %v436, 0.25
    %v997 = vmul.f32 %v933, 0.75
    %v998 = vmul.f32 %v934, 0.75
    %v999 = vmul.f32 %v935, 0.75
    %v1000 = vmul.f32 %v936, 0.75
    %v1001 = vmul.f32 %v937, 0.75
    %v1002 = vmul.f32 %v938, 0.75
    %v1003 = vmul.f32 %v939, 0.75
    %v1004 = vmul.f32 %v940, 0.75
    %v1005 = vmul.f32 %v941, 0.75
    %v1006 = vmul.f32 %v942, 0.75
    %v1007 = vmul.f32 %v943, 0.75
    %v1008 = vmul.f32 %v944, 0.75
    %v1009 = vmul.f32 %v945, 0.75
    %v1010 = vmul.f32 %v946, 0.75
    %v1011 = vmul.f32 %v947, 0.75
    %v1012 = vmul.f32 %v948, 0.75
    %v1013 = vadd.f32 %v981, %v997
    %v1014 = vadd.f32 %v982, %v998
    %v1015 = vadd.f32 %v983, %v999
    %v1016 = vadd.f32 %v984, %v1000
    %v1017 = vadd.f32 %v985, %v1001
    %v1018 = vadd.f32 %v986, %v1002
    %v1019 = vadd.f32 %v987, %v1003
    %v1020 = vadd.f32 %v988, %v1004
    %v1021 = vadd.f32 %v989, %v1005
    %v1022 = vadd.f32 %v990, %v1006
    %v1023 = vadd.f32 %v991, %v1007
    %v1024 = vadd.f32 %v992, %v1008
    %v1025 = vadd.f32 %v993, %v1009
    %v1026 = vadd.f32 %v994, %v1010
    %v1027 = vadd.f32 %v995, %v1011
    %v1028 = vadd.f32 %v996, %v1012
    %v1029 = vsub.f32 1.0, %v965
    %v1030 = vsub.f32 1.0, %v966
    %v1031 = vsub.f32 1.0, %v967
    %v1032 = vsub.f32 1.0, %v968
    %v1033 = vsub.f32 1.0, %v969
    %v1034 = vsub.f32 1.0, %v970
    %v1035 = vsub.f32 1.0, %v971
    %v1036 = vsub.f32 1.0, %v972
    %v1037 = vsub.f32 1.0, %v973
    %v1038 = vsub.f32 1.0, %v974
    %v1039 = vsub.f32 1.0, %v975
    %v1040 = vsub.f32 1.0, %v976
    %v1041 = vsub.f32 1.0, %v977
    %v1042 = vsub.f32 1.0, %v978
    %v1043 = vsub.f32 1.0, %v979
    %v1044 = vsub.f32 1.0, %v980
    %v1045 = vmul.f32 %v1013, %v1029
    %v1046 = vmul.f32 %v1014, %v1030
    %v1047 = vmul.f32 %v1015, %v1031
    %v1048 = vmul.f32 %v1016, %v1032
    %v1049 = vmul.f32 %v1017, %v1033
    %v1050 = vmul.f32 %v1018, %v1034
    %v1051 = vmul.f32 %v1019, %v1035
    %v1052 = vmul.f32 %v1020, %v1036
    %v1053 = vmul.f32 %v1021, %v1037
    %v1054 = vmul.f32 %v1022, %v1038
    %v1055 = vmul.f32 %v1023, %v1039
    %v1056 = vmul.f32 %v1024, %v1040
    %v1057 = vmul.f32 %v1025, %v1041
    %v1058 = vmul.f32 %v1026, %v1042
    %v1059 = vmul.f32 %v1027, %v1043
    %v1060 = vmul.f32 %v1028, %v1044
    %v1061 = vmul.f32 %v1045, %v1029
    %v1062 = vmul.f32 %v1046, %v1030
    %v1063 = vmul.f32 %v1047, %v1031
    %v1064 = vmul.f32 %v1048, %v1032
    %v1065 = vmul.f32 %v1049, %v1033
    %v1066 = vmul.f32 %v1050, %v1034
    %v1067 = vmul.f32 %v1051, %v1035
    %v1068 = vmul.f32 %v1052, %v1036
    %v1069 = vmul.f32 %v1053, %v1037
    %v1070 = vmul.f32 %v1054, %v1038
    %v1071 = vmul.f32 %v1055, %v1039
    %v1072 = vmul.f32 %v1056, %v1040
    %v1073 = vmul.f32 %v1057, %v1041
    %v1074 = vmul.f32 %v1058, %v1042
    %v1075 = vmul.f32 %v1059, %v1043
    %v1076 = vmul.f32 %v1060, %v1044
    %v1077 = vmul.f32 %v1061, %v885
    %v1078 = vmul.f32 %v1062, %v886
    %v1079 = vmul.f32 %v1063, %v887
    %v1080 = vmul.f32 %v1064, %v888
    %v1081 = vmul.f32 %v1065, %v889
    %v1082 = vmul.f32 %v1066, %v890
    %v1083 = vmul.f32 %v1067, %v891
    %v1084 = vmul.f32 %v1068, %v892
    %v1085 = vmul.f32 %v1069, %v893
    %v1086 = vmul.f32 %v1070, %v894
    %v1087 = vmul.f32 %v1071, %v895
    %v1088 = vmul.f32 %v1072, %v896
    %v1089 = vmul.f32 %v1073, %v897
    %v1090 = vmul.f32 %v1074, %v898
    %v1091 = vmul.f32 %v1075, %v899
    %v1092 = vmul.f32 %v1076, %v900
    %v1093 = vmul.f32 %v1077, %v305
    %v1094 = vmul.f32 %v1078, %v305
    %v1095 = vmul.f32 %v1079, %v305
    %v1096 = vmul.f32 %v1080, %v305
    %v1097 = vmul.f32 %v1081, %v305
    %v1098 = vmul.f32 %v1082, %v305
    %v1099 = vmul.f32 %v1083, %v305
    %v1100 = vmul.f32 %v1084, %v305
    %v1101 = vmul.f32 %v1085, %v305
    %v1102 = vmul.f32 %v1086, %v305
    %v1103 = vmul.f32 %v1087, %v305
    %v1104 = vmul.f32 %v1088, %v305
    %v1105 = vmul.f32 %v1089, %v305
    %v1106 = vmul.f32 %v1090, %v305
    %v1107 = vmul.f32 %v1091, %v305
    %v1108 = vmul.f32 %v1092, %v305
    %v1109 = vsub.f32 %v246, %v285
    %v1110 = vsub.f32 %v248, %v286
    %v1111 = vsub.f32 %v251, %v287
    %v1112 = vsub.f32 %v253, %v288
    %v1113 = vsub.f32 %v256, %v289
    %v1114 = vsub.f32 %v258, %v290
    %v1115 = vsub.f32 %v261, %v291
    %v1116 = vsub.f32 %v263, %v292
    %v1117 = vsub.f32 %v266, %v293
    %v1118 = vsub.f32 %v268, %v294
    %v1119 = vsub.f32 %v271, %v295
    %v1120 = vsub.f32 %v273, %v296
    %v1121 = vsub.f32 %v276, %v297
    %v1122 = vsub.f32 %v278, %v298
    %v1123 = vsub.f32 %v281, %v299
    %v1124 = vsub.f32 %v283, %v300
    %v1125 = vand.u32 2147483647, %v1109
    %v1126 = vand.u32 2147483647, %v1110
    %v1127 = vand.u32 2147483647, %v1111
    %v1128 = vand.u32 2147483647, %v1112
    %v1129 = vand.u32 2147483647, %v1113
    %v1130 = vand.u32 2147483647, %v1114
    %v1131 = vand.u32 2147483647, %v1115
    %v1132 = vand.u32 2147483647, %v1116
    %v1133 = vand.u32 2147483647, %v1117
    %v1134 = vand.u32 2147483647, %v1118
    %v1135 = vand.u32 2147483647, %v1119
    %v1136 = vand.u32 2147483647, %v1120
    %v1137 = vand.u32 2147483647, %v1121
    %v1138 = vand.u32 2147483647, %v1122
    %v1139 = vand.u32 2147483647, %v1123
    %v1140 = vand.u32 2147483647, %v1124
    %v1141 = vmul.f32 %v1125, %v310
    %v1142 = vmul.f32 %v1126, %v310
    %v1143 = vmul.f32 %v1127, %v310
    %v1144 = vmul.f32 %v1128, %v310
    %v1145 = vmul.f32 %v1129, %v310
    %v1146 = vmul.f32 %v1130, %v310
    %v1147 = vmul.f32 %v1131, %v310
    %v1148 = vmul.f32 %v1132, %v310
    %v1149 = vmul.f32 %v1133, %v310
    %v1150 = vmul.f32 %v1134, %v310
    %v1151 = vmul.f32 %v1135, %v310
    %v1152 = vmul.f32 %v1136, %v310
    %v1153 = vmul.f32 %v1137, %v310
    %v1154 = vmul.f32 %v1138, %v310
    %v1155 = vmul.f32 %v1139, %v310
    %v1156 = vmul.f32 %v1140, %v310
    %v1157 = vmul.f32 %v1141, %v333
    %v1158 = vmul.f32 %v1142, %v336
    %v1159 = vmul.f32 %v1143, %v339
    %v1160 = vmul.f32 %v1144, %v342
    %v1161 = vmul.f32 %v1145, %v345
    %v1162 = vmul.f32 %v1146, %v348
    %v1163 = vmul.f32 %v1147, %v351
    %v1164 = vmul.f32 %v1148, %v354
    %v1165 = vmul.f32 %v1149, %v357
    %v1166 = vmul.f32 %v1150, %v360
    %v1167 = vmul.f32 %v1151, %v363
    %v1168 = vmul.f32 %v1152, %v366
    %v1169 = vmul.f32 %v1153, %v369
    %v1170 = vmul.f32 %v1154, %v372
    %v1171 = vmul.f32 %v1155, %v375
    %v1172 = vmul.f32 %v1156, %v378
    %v1173 = vadd.f32 %v1093, %v1157
    %v1174 = vadd.f32 %v1094, %v1158
    %v1175 = vadd.f32 %v1095, %v1159
    %v1176 = vadd.f32 %v1096, %v1160
    %v1177 = vadd.f32 %v1097, %v1161
    %v1178 = vadd.f32 %v1098, %v1162
    %v1179 = vadd.f32 %v1099, %v1163
    %v1180 = vadd.f32 %v1100, %v1164
    %v1181 = vadd.f32 %v1101, %v1165
    %v1182 = vadd.f32 %v1102, %v1166
    %v1183 = vadd.f32 %v1103, %v1167
    %v1184 = vadd.f32 %v1104, %v1168
    %v1185 = vadd.f32 %v1105, %v1169
    %v1186 = vadd.f32 %v1106, %v1170
    %v1187 = vadd.f32 %v1107, %v1171
    %v1188 = vadd.f32 %v1108, %v1172
    %v1189 = vsel %vm330, %v1173, 0.0
    %v1190 = vsel %vm330, %v1174, 0.0
    %v1191 = vadd.f32 %v1189, %v1190
    %v1192 = vsel %vm330, %v1175, 0.0
    %v1193 = vadd.f32 %v1191, %v1192
    %v1194 = vsel %vm330, %v1176, 0.0
    %v1195 = vadd.f32 %v1193, %v1194
    %v1196 = vsel %vm330, %v1177, 0.0
    %v1197 = vadd.f32 %v1195, %v1196
    %v1198 = vsel %vm330, %v1178, 0.0
    %v1199 = vadd.f32 %v1197, %v1198
    %v1200 = vsel %vm330, %v1179, 0.0
    %v1201 = vadd.f32 %v1199, %v1200
    %v1202 = vsel %vm330, %v1180, 0.0
    %v1203 = vadd.f32 %v1201, %v1202
    %v1204 = vsel %vm330, %v1181, 0.0
    %v1205 = vadd.f32 %v1203, %v1204
    %v1206 = vsel %vm330, %v1182, 0.0
    %v1207 = vadd.f32 %v1205, %v1206
    %v1208 = vsel %vm330, %v1183, 0.0
    %v1209 = vadd.f32 %v1207, %v1208
    %v1210 = vsel %vm330, %v1184, 0.0
    %v1211 = vadd.f32 %v1209, %v1210
    %v1212 = vsel %vm330, %v1185, 0.0
    %v1213 = vadd.f32 %v1211, %v1212
    %v1214 = vsel %vm330, %v1186, 0.0
    %v1215 = vadd.f32 %v1213, %v1214
    %v1216 = vsel %vm330, %v1187, 0.0
    %v1217 = vadd.f32 %v1215, %v1216
    %v1218 = vsel %vm330, %v1188, 0.0
    %v1219 = vadd.f32 %v1217, %v1218
    %1220 = vadd.xlane.f32.xlu0 %v1219
    %v1221 = vpop.xlane.xlu0 %1220
    %v1222 = vrot.slane %v1221, 4
    %v1223 = vadd.f32 %v1221, %v1222
    %v1224 = vrot.slane %v1223, 2
    %v1225 = vadd.f32 %v1223, %v1224
    %v1226 = vrot.slane %v1225, 1
    %v1227 = vadd.f32 %v1225, %v1226
    %s1228 = vtos %v1227
    %v1229 = vstv %s420
    %v1230 = vrcp.pop %v1229
    %v1231 = vmul.f32 %v1229, %v1230
    %v1232 = vsub.f32 1.0, %v1231
    %v1233 = vmul.f32 %v1230, %v1232
    %v1234 = vadd.f32 %v1230, %v1233
    %vm1235 = vweird.f32 %v1229
    %vm1236 = vweird.f32 %v1230
    %vm1237 = vmor %vm1235, %vm1236
    %v1238 = vsel %vm1237, %v1230, %v1234
    %v1239 = vand.u32 2147483647, %v1229
    %vm1240 = vcmp.eq.f32.partialorder %v1239, 8.507059e+37
    %v1241 = vand.u32 %v1229, 2147483648
    %v1242 = vor.u32 1.1754944e-38, %v1241
    %v1243 = vsel %vm1240, %v1242, %v1238
    %s1244 = vtos %v1243
    %s1245 = smul.f32 %s1228, %s1244
    %s1246 = scalar_lea.smem [#allocation2], 0
    %1247 = sst [smem:[%s1246]] %s1245
    // Predicated region
    $region22: #{detection_loss.1} parent=1 // pred_check
      _
    $region23: #{detection_loss.1} parent=1 // pred_check_branch
      %1249 = sbr.rel (0) target = $region25
    $region24: #{detection_loss.1} parent=1 // pred_region
      %1251 = vsyncadd [#allocation3], 0
      %s1253 = sshll.u32 %s5, 4
      %s1254 = int_to_ptr.hbm [resolvable:$true] %s1253
      %1256 = dma.smem_to_hbm [#allocation2], 16, %s1254, [#allocation3]
    $region25: #{detection_loss.1} parent=1 // pred_fallthru
      _
    // Predicated region
    $region26: #{detection_loss.1} parent=1 // pred_check
      _
    $region27: #{detection_loss.1} parent=1 // pred_check_branch
      %1258 = sbr.rel (0) target = $region29
    $region28: #{detection_loss.1} parent=1 // pred_region
      %1260 = dma.done [#allocation3], 16
    $region29: #{detection_loss.1} parent=1 // pred_fallthru
      _
    %1261 = sfence
    %1262 = vsyncpa [#allocation3], 1

</llo_original>
